<compile_context>
chip_gen: v7x
topology: tpu7x:2x2x1
jax: 0.10.0
libtpu: 0.0.40
codegen_flags: <defaults>
</compile_context>

<pallas_src>
import jax
import jax.numpy as jnp
from jax.experimental import pallas as pl
from jax.experimental.pallas import tpu as pltpu


def _round_up(x, m):
    return (x + m - 1) // m * m


def _rnn_critic_kernel(xh_ref, c_ref, w_ref, b_ref, w_out_ref, b_out_ref,
                       v_ref, h_out_ref, c_out_ref):
    """One LSTMCell step + Linear(hid, 1) value head for one batch tile."""
    Hp = c_ref.shape[-1]

    # Single fused gate matmul on the MXU: [x | h] @ [W_ih^T ; W_hh^T] (bf16
    # operands, f32 accumulation).  Bias add and everything below is f32 VPU.
    xh = xh_ref[...].astype(jnp.bfloat16)                     # (bb, Ip+Hp)
    gates = jnp.dot(xh, w_ref[...],
                    preferred_element_type=jnp.float32) + b_ref[...]

    def _sigmoid(z):                    # logistic via one EUP tanh (no divide)
        return 0.5 * jnp.tanh(0.5 * z) + 0.5

    # PyTorch LSTMCell gate order: i, f, g, o.  Hp is a multiple of 128, so
    # every slice is 128-lane aligned (a free view, no relayout copy).
    i_g = _sigmoid(gates[:, 0 * Hp:1 * Hp])
    f_g = _sigmoid(gates[:, 1 * Hp:2 * Hp])
    g_g = jnp.tanh(gates[:, 2 * Hp:3 * Hp])
    o_g = _sigmoid(gates[:, 3 * Hp:4 * Hp])

    c = c_ref[...]
    c_new = f_g * c + i_g * g_g
    h_new = o_g * jnp.tanh(c_new)

    # Value head Linear(H, 1): VPU mul + lane reduction (an N=1 MXU matmul
    # would waste a full push); output bias comes from SMEM as a scalar.
    v = jnp.sum(h_new * w_out_ref[...], axis=-1, keepdims=True) + b_out_ref[0, 0]

    v_ref[...] = v
    h_out_ref[...] = h_new
    c_out_ref[...] = c_new


def _vmem_bytes_estimate(block_b, i_pad, h_pad):
    """Rough VMEM footprint for one grid step (inputs/outputs double-buffered)."""
    k_pad = i_pad + h_pad
    weights = k_pad * 4 * h_pad * 2                 # bf16 fused gate weights
    consts = 4 * h_pad * 4 + h_pad * 4              # bias + w_out (f32)
    in_tiles = block_b * (k_pad + h_pad) * 4        # [x|h] + c tiles (f32)
    out_tiles = block_b * (2 * h_pad + 128) * 4     # h_new, c_new, v tiles
    temps = block_b * 4 * h_pad * 4 * 3 + block_b * h_pad * 4 * 6
    return 2 * (weights + consts) + 2 * (in_tiles + out_tiles) + temps


_VMEM_BUDGET = 40 << 20   # headroom under v7x's 64 MiB physical VMEM


def _pick_block_b(batch, i_pad, h_pad):
    """Sublane-aligned batch tile.  Guarantees >=2 tiles when batch >= 16 so
    the 'parallel' grid axis can shard across both v7x TensorCores, and clamps
    the tile against the VMEM budget."""
    if batch < 16 or batch % 8 != 0:
        return batch                      # full-array block is always legal
    cap = batch // 4 if batch >= 64 else batch // 2
    cap = min(512, cap)
    for cand in range(cap - cap % 8, 7, -8):
        if batch % cand == 0 and _vmem_bytes_estimate(cand, i_pad, h_pad) <= _VMEM_BUDGET:
            return cand
    return 8


@jax.jit
def _rnn_critic_apply(x, h, c, w_cat, bias, w_out, b_out):
    B, I = x.shape
    Hp = h.shape[-1]
    Kp = w_cat.shape[0]
    Ip = Kp - Hp

    if I != Ip:                                     # lane-pad x once per step
        x = jnp.pad(x, ((0, 0), (0, Ip - I)))
    xh = jnp.concatenate([x, h], axis=-1)           # (B, Ip + Hp)

    block_b = _pick_block_b(B, Ip, Hp)
    grid = (B // block_b,)

    vmem_limit = int(min(64 << 20,
                         max(8 << 20, 2 * _vmem_bytes_estimate(block_b, Ip, Hp))))

    v2d, h_new, c_new = pl.pallas_call(
        _rnn_critic_kernel,
        out_shape=(
            jax.ShapeDtypeStruct((B, 1), jnp.float32),
            jax.ShapeDtypeStruct((B, Hp), jnp.float32),
            jax.ShapeDtypeStruct((B, Hp), jnp.float32),
        ),
        grid=grid,
        in_specs=[
            pl.BlockSpec((block_b, Kp), lambda i: (i, 0)),        # [x | h]
            pl.BlockSpec((block_b, Hp), lambda i: (i, 0)),        # c
            pl.BlockSpec((Kp, 4 * Hp), lambda i: (0, 0)),         # fused W (bf16)
            pl.BlockSpec((1, 4 * Hp), lambda i: (0, 0)),          # b_ih + b_hh
            pl.BlockSpec((1, Hp), lambda i: (0, 0)),              # W_out
            pl.BlockSpec(memory_space=pltpu.MemorySpace.SMEM),    # b_out scalar
        ],
        out_specs=(
            pl.BlockSpec((block_b, 1), lambda i: (i, 0)),         # v
            pl.BlockSpec((block_b, Hp), lambda i: (i, 0)),        # h_new
            pl.BlockSpec((block_b, Hp), lambda i: (i, 0)),        # c_new
        ),
        compiler_params=pltpu.CompilerParams(
            dimension_semantics=("parallel",),
            vmem_limit_bytes=vmem_limit),
    )(xh, c, w_cat, bias, w_out, b_out)

    return v2d[:, 0], h_new, c_new   # squeeze(-1) done on-device under jit


class RNNCritic:
    """JAX/Pallas port of the PyTorch RNNCritic (LSTMCell + Linear(hid, 1)).

    Recurrent bookkeeping (init flag, carried h/c, reset()) mirrors the PyTorch
    module and lives Python-side.  The carried state is kept lane-padded to
    Hp = round_up(hid_size, 128); the padded columns are exactly zero.
    """

    def __init__(self, inp_size, hid_size, key):
        self.inp_size = inp_size
        self.hid_size = hid_size
        self.i_pad = _round_up(inp_size, 128)
        self.h_pad = _round_up(hid_size, 128)
        I, H, Ip, Hp = inp_size, hid_size, self.i_pad, self.h_pad

        bound = hid_size ** -0.5
        keys = jax.random.split(key, 6)

        def _u(k, shape):
            return jax.random.uniform(k, shape, jnp.float32, -bound, bound)

        # LSTMCell / Linear params at their true sizes (PyTorch stores
        # weight_ih as (4H, I), weight_hh as (4H, H); kept pre-transposed).
        w_ih_t = _u(keys[0], (I, 4 * H))
        w_hh_t = _u(keys[1], (H, 4 * H))
        b_ih = _u(keys[2], (4 * H,))
        b_hh = _u(keys[3], (4 * H,))
        w_out = _u(keys[4], (1, H))
        b_out = jax.random.uniform(keys[5], (1, 1), jnp.float32, -bound, bound)

        # f32 originals kept for reference checks.
        self.ref_params = dict(w_ih_t=w_ih_t, w_hh_t=w_hh_t,
                               bias=(b_ih + b_hh), w_out=w_out, b_out=b_out)

        # Fuse [W_ih^T ; W_hh^T] into one (Ip+Hp, 4*Hp) bf16 matrix with each
        # gate's columns lane-padded to Hp.  Padded rows/cols are zero, so the
        # padded h/c columns stay exactly zero through the recurrence.
        w_cat = jnp.zeros((Ip + Hp, 4 * Hp), jnp.float32)
        bias = jnp.zeros((1, 4 * Hp), jnp.float32)
        for g in range(4):
            w_cat = w_cat.at[:I, g * Hp:g * Hp + H].set(w_ih_t[:, g * H:(g + 1) * H])
            w_cat = w_cat.at[Ip:Ip + H, g * Hp:g * Hp + H].set(
                w_hh_t[:, g * H:(g + 1) * H])
            bias = bias.at[0, g * Hp:g * Hp + H].set(
                b_ih[g * H:(g + 1) * H] + b_hh[g * H:(g + 1) * H])
        self.w_cat = w_cat.astype(jnp.bfloat16)     # bf16 MXU operand
        self.bias = bias                            # f32, added post-matmul
        self.w_out = jnp.zeros((1, Hp), jnp.float32).at[:, :H].set(w_out)
        self.b_out = b_out                          # (1,1) f32 -> SMEM scalar

        # Learned initial state (zeros, matching the nn.Parameter init), padded.
        self.h0 = jnp.zeros((1, Hp), jnp.float32)
        self.c0 = jnp.zeros((1, Hp), jnp.float32)

        self.init = True
        self.h = None
        self.c = None

    def forward(self, obs):
        obs = jnp.asarray(obs, jnp.float32)
        B = obs.shape[0]
        if self.init:
            h = jnp.broadcast_to(self.h0, (B, self.h_pad))
            c = jnp.broadcast_to(self.c0, (B, self.h_pad))
            self.init = False
        else:
            h, c = self.h, self.c
            assert h.shape[0] == B, "batch size changed mid-episode; call reset()"
        v, self.h, self.c = _rnn_critic_apply(
            obs, h, c, self.w_cat, self.bias, self.w_out, self.b_out)
        return v   # (B,) device array; no host round-trip

    def reset(self):
        self.init = True
        self.h = None
        self.c = None


if __name__ == "__main__":
    key = jax.random.PRNGKey(0)
    k_param, k_obs1, k_obs2 = jax.random.split(key, 3)

    B, I, H = 8, 16, 32
    critic = RNNCritic(inp_size=I, hid_size=H, key=k_param)

    obs1 = jax.random.uniform(k_obs1, (B, I), dtype=jnp.float32)
    obs2 = jax.random.uniform(k_obs2, (B, I), dtype=jnp.float32)

    v1 = critic.forward(obs1)          # step 1 (uses h0/c0)
    v2 = critic.forward(obs2)          # step 2 (uses carried h/c)
    jax.block_until_ready((v1, v2, critic.h, critic.c))
    assert v1.shape == (B,) and v2.shape == (B,)

    # ---- reference A: identical numerics (bf16 operands, padded layout) -----
    Hp, Ip = critic.h_pad, critic.i_pad
    sig = lambda z: 0.5 * jnp.tanh(0.5 * z) + 0.5

    def ref_step_bf16(x, h, c):
        x = jnp.pad(x, ((0, 0), (0, Ip - I)))
        xh = jnp.concatenate([x, h], axis=-1).astype(jnp.bfloat16)
        gates = jnp.dot(xh, critic.w_cat,
                        preferred_element_type=jnp.float32) + critic.bias
        i_g = sig(gates[:, :Hp]); f_g = sig(gates[:, Hp:2 * Hp])
        g_g = jnp.tanh(gates[:, 2 * Hp:3 * Hp]); o_g = sig(gates[:, 3 * Hp:])
        c_n = f_g * c + i_g * g_g
        h_n = o_g * jnp.tanh(c_n)
        v = jnp.sum(h_n * critic.w_out, axis=-1) + critic.b_out[0, 0]
        return v, h_n, c_n

    h_a = jnp.zeros((B, Hp), jnp.float32)
    c_a = jnp.zeros((B, Hp), jnp.float32)
    ra1, h_a, c_a = ref_step_bf16(obs1, h_a, c_a)
    ra2, h_a, c_a = ref_step_bf16(obs2, h_a, c_a)
    assert jnp.allclose(v1, ra1, rtol=2e-3, atol=2e-3)
    assert jnp.allclose(v2, ra2, rtol=2e-3, atol=2e-3)
    assert jnp.allclose(critic.h, h_a, rtol=2e-3, atol=2e-3)
    assert jnp.allclose(critic.c, c_a, rtol=2e-3, atol=2e-3)

    # ---- reference B: original f32 PyTorch-style math (looser tolerance for
    #      the intentional bf16 matmul-operand quantization) ------------------
    p = critic.ref_params
    hp = jax.lax.Precision.HIGHEST

    def ref_step_f32(x, h, c):
        gates = (jnp.dot(x, p["w_ih_t"], precision=hp)
                 + jnp.dot(h, p["w_hh_t"], precision=hp) + p["bias"])
        i_g = jax.nn.sigmoid(gates[:, :H])
        f_g = jax.nn.sigmoid(gates[:, H:2 * H])
        g_g = jnp.tanh(gates[:, 2 * H:3 * H])
        o_g = jax.nn.sigmoid(gates[:, 3 * H:])
        c_n = f_g * c + i_g * g_g
        h_n = o_g * jnp.tanh(c_n)
        v = jnp.sum(h_n * p["w_out"], axis=-1) + p["b_out"][0, 0]
        return v, h_n, c_n

    h_b = jnp.zeros((B, H), jnp.float32)
    c_b = jnp.zeros((B, H), jnp.float32)
    rb1, h_b, c_b = ref_step_f32(obs1, h_b, c_b)
    rb2, h_b, c_b = ref_step_f32(obs2, h_b, c_b)
    assert jnp.allclose(v1, rb1, rtol=5e-2, atol=5e-2)
    assert jnp.allclose(v2, rb2, rtol=5e-2, atol=5e-2)
    assert jnp.allclose(critic.h[:, :H], h_b, rtol=5e-2, atol=5e-2)
    assert jnp.allclose(critic.c[:, :H], c_b, rtol=5e-2, atol=5e-2)

    critic.reset()
    assert critic.init and critic.h is None and critic.c is None

    print("KERNEL_OK")
</pallas_src>

<mosaic_0001>
module attributes {stable_mosaic.version = 11 : i64} {
  func.func @_rnn_critic_kernel(%arg0: i32, %arg1: memref<8x256xf32, #tpu.memory_space<vmem>>, %arg2: memref<8x128xf32, #tpu.memory_space<vmem>>, %arg3: memref<256x512xbf16, #tpu.memory_space<vmem>>, %arg4: memref<1x512xf32, #tpu.memory_space<vmem>>, %arg5: memref<1x128xf32, #tpu.memory_space<vmem>>, %arg6: memref<1x1xf32, #tpu.memory_space<smem>>, %arg7: memref<8x1xf32, #tpu.memory_space<vmem>>, %arg8: memref<8x128xf32, #tpu.memory_space<vmem>>, %arg9: memref<8x128xf32, #tpu.memory_space<vmem>>) attributes {dimension_semantics = [#tpu.dimension_semantics<parallel>], iteration_bounds = array<i64: 1>, scalar_prefetch = 0 : i64, scratch_operands = 0 : i64, tpu.core_type = #tpu.core_type<tc>, window_params = [{transform_indices = @transform_0, window_bounds = array<i64: 8, 256>}, {transform_indices = @transform_1, window_bounds = array<i64: 8, 128>}, {pipeline_mode = #tpu.pipeline_mode<synchronous>, transform_indices = @transform_2, window_bounds = array<i64: 256, 512>}, {pipeline_mode = #tpu.pipeline_mode<synchronous>, transform_indices = @transform_3, window_bounds = array<i64: 1, 512>}, {pipeline_mode = #tpu.pipeline_mode<synchronous>, transform_indices = @transform_4, window_bounds = array<i64: 1, 128>}, {transform_indices = @transform_5, window_bounds = array<i64: 1, 1>}, {transform_indices = @transform_6, window_bounds = array<i64: 8, 1>}, {transform_indices = @transform_7, window_bounds = array<i64: 8, 128>}, {transform_indices = @transform_8, window_bounds = array<i64: 8, 128>}]} {
    %c0 = arith.constant 0 : index
    %c0_0 = arith.constant 0 : index
    %0 = vector.load %arg1[%c0, %c0_0] : memref<8x256xf32, #tpu.memory_space<vmem>>, vector<8x256xf32>
    %1 = arith.truncf %0 : vector<8x256xf32> to vector<8x256xbf16>
    %c0_1 = arith.constant 0 : index
    %c0_2 = arith.constant 0 : index
    %2 = vector.load %arg3[%c0_1, %c0_2] : memref<256x512xbf16, #tpu.memory_space<vmem>>, vector<256x512xbf16>
    %cst = arith.constant dense<0.000000e+00> : vector<8x512xf32>
    %3 = tpu.matmul %1, %2, %cst {dimension_numbers = #tpu.dot_dimension_numbers<[1], [0], [0], [1], [0, 0, 1, 1], [], []>} : vector<8x256xbf16>, vector<256x512xbf16>, vector<8x512xf32> -> vector<8x512xf32>
    %c0_3 = arith.constant 0 : index
    %c0_4 = arith.constant 0 : index
    %4 = vector.load %arg4[%c0_3, %c0_4] : memref<1x512xf32, #tpu.memory_space<vmem>>, vector<1x512xf32>
    %5 = vector.broadcast %4 : vector<1x512xf32> to vector<8x512xf32>
    %6 = arith.addf %3, %5 : vector<8x512xf32>
    %7 = vector.extract_strided_slice %6 {offsets = [0, 0], sizes = [8, 128], strides = [1, 1]} : vector<8x512xf32> to vector<8x128xf32>
    %cst_5 = arith.constant 5.000000e-01 : f32
    %8 = vector.broadcast %cst_5 : f32 to vector<8x128xf32>
    %9 = arith.mulf %8, %7 : vector<8x128xf32>
    %10 = math.tanh %9 : vector<8x128xf32>
    %cst_6 = arith.constant 5.000000e-01 : f32
    %11 = vector.broadcast %cst_6 : f32 to vector<8x128xf32>
    %12 = arith.mulf %11, %10 : vector<8x128xf32>
    %cst_7 = arith.constant 5.000000e-01 : f32
    %13 = vector.broadcast %cst_7 : f32 to vector<8x128xf32>
    %14 = arith.addf %12, %13 : vector<8x128xf32>
    %15 = vector.extract_strided_slice %6 {offsets = [0, 128], sizes = [8, 128], strides = [1, 1]} : vector<8x512xf32> to vector<8x128xf32>
    %cst_8 = arith.constant 5.000000e-01 : f32
    %16 = vector.broadcast %cst_8 : f32 to vector<8x128xf32>
    %17 = arith.mulf %16, %15 : vector<8x128xf32>
    %18 = math.tanh %17 : vector<8x128xf32>
    %cst_9 = arith.constant 5.000000e-01 : f32
    %19 = vector.broadcast %cst_9 : f32 to vector<8x128xf32>
    %20 = arith.mulf %19, %18 : vector<8x128xf32>
    %cst_10 = arith.constant 5.000000e-01 : f32
    %21 = vector.broadcast %cst_10 : f32 to vector<8x128xf32>
    %22 = arith.addf %20, %21 : vector<8x128xf32>
    %23 = vector.extract_strided_slice %6 {offsets = [0, 256], sizes = [8, 128], strides = [1, 1]} : vector<8x512xf32> to vector<8x128xf32>
    %24 = math.tanh %23 : vector<8x128xf32>
    %25 = vector.extract_strided_slice %6 {offsets = [0, 384], sizes = [8, 128], strides = [1, 1]} : vector<8x512xf32> to vector<8x128xf32>
    %cst_11 = arith.constant 5.000000e-01 : f32
    %26 = vector.broadcast %cst_11 : f32 to vector<8x128xf32>
    %27 = arith.mulf %26, %25 : vector<8x128xf32>
    %28 = math.tanh %27 : vector<8x128xf32>
    %cst_12 = arith.constant 5.000000e-01 : f32
    %29 = vector.broadcast %cst_12 : f32 to vector<8x128xf32>
    %30 = arith.mulf %29, %28 : vector<8x128xf32>
    %cst_13 = arith.constant 5.000000e-01 : f32
    %31 = vector.broadcast %cst_13 : f32 to vector<8x128xf32>
    %32 = arith.addf %30, %31 : vector<8x128xf32>
    %c0_14 = arith.constant 0 : index
    %c0_15 = arith.constant 0 : index
    %33 = vector.load %arg2[%c0_14, %c0_15] : memref<8x128xf32, #tpu.memory_space<vmem>>, vector<8x128xf32>
    %34 = arith.mulf %22, %33 : vector<8x128xf32>
    %35 = arith.mulf %14, %24 : vector<8x128xf32>
    %36 = arith.addf %34, %35 : vector<8x128xf32>
    %37 = math.tanh %36 : vector<8x128xf32>
    %38 = arith.mulf %32, %37 : vector<8x128xf32>
    %c0_16 = arith.constant 0 : index
    %c0_17 = arith.constant 0 : index
    %39 = vector.load %arg5[%c0_16, %c0_17] : memref<1x128xf32, #tpu.memory_space<vmem>>, vector<1x128xf32>
    %40 = vector.broadcast %39 : vector<1x128xf32> to vector<8x128xf32>
    %41 = arith.mulf %38, %40 : vector<8x128xf32>
    %cst_18 = arith.constant dense<0.000000e+00> : vector<8xf32>
    %42 = vector.multi_reduction <add>, %41, %cst_18 [1] : vector<8x128xf32> to vector<8xf32>
    %43 = vector.shape_cast %42 : vector<8xf32> to vector<8x1xf32>
    %c0_19 = arith.constant 0 : index
    %c0_20 = arith.constant 0 : index
    %44 = memref.load %arg6[%c0_19, %c0_20] : memref<1x1xf32, #tpu.memory_space<smem>>
    %45 = vector.broadcast %44 : f32 to vector<8x1xf32>
    %46 = arith.addf %43, %45 : vector<8x1xf32>
    %c0_21 = arith.constant 0 : index
    %c0_22 = arith.constant 0 : index
    %47 = vector.load %arg7[%c0_21, %c0_22] : memref<8x1xf32, #tpu.memory_space<vmem>>, vector<8x1xf32>
    tpu.vector_store %arg7[%c0_21, %c0_22], %46 {strides = array<i32>} : memref<8x1xf32, #tpu.memory_space<vmem>>, vector<8x1xf32>,
    %c0_23 = arith.constant 0 : index
    %c0_24 = arith.constant 0 : index
    %48 = vector.load %arg8[%c0_23, %c0_24] : memref<8x128xf32, #tpu.memory_space<vmem>>, vector<8x128xf32>
    tpu.vector_store %arg8[%c0_23, %c0_24], %38 {strides = array<i32>} : memref<8x128xf32, #tpu.memory_space<vmem>>, vector<8x128xf32>,
    %c0_25 = arith.constant 0 : index
    %c0_26 = arith.constant 0 : index
    %49 = vector.load %arg9[%c0_25, %c0_26] : memref<8x128xf32, #tpu.memory_space<vmem>>, vector<8x128xf32>
    tpu.vector_store %arg9[%c0_25, %c0_26], %36 {strides = array<i32>} : memref<8x128xf32, #tpu.memory_space<vmem>>, vector<8x128xf32>,
    return
  }
  func.func @transform_0(%arg0: i32) -> (i32, i32) {
    %c0_i32 = arith.constant 0 : i32
    %c0_i32_0 = arith.constant 0 : i32
    return %arg0, %c0_i32 : i32, i32
  }
  func.func @transform_1(%arg0: i32) -> (i32, i32) {
    %c0_i32 = arith.constant 0 : i32
    %c0_i32_0 = arith.constant 0 : i32
    return %arg0, %c0_i32 : i32, i32
  }
  func.func @transform_2(%arg0: i32) -> (i32, i32) {
    %c0_i32 = arith.constant 0 : i32
    %c0_i32_0 = arith.constant 0 : i32
    %c0_i32_1 = arith.constant 0 : i32
    return %c0_i32, %c0_i32_0 : i32, i32
  }
  func.func @transform_3(%arg0: i32) -> (i32, i32) {
    %c0_i32 = arith.constant 0 : i32
    %c0_i32_0 = arith.constant 0 : i32
    %c0_i32_1 = arith.constant 0 : i32
    return %c0_i32, %c0_i32_0 : i32, i32
  }
  func.func @transform_4(%arg0: i32) -> (i32, i32) {
    %c0_i32 = arith.constant 0 : i32
    %c0_i32_0 = arith.constant 0 : i32
    %c0_i32_1 = arith.constant 0 : i32
    return %c0_i32, %c0_i32_0 : i32, i32
  }
  func.func @transform_5(%arg0: i32) -> (i32, i32) {
    %c0_i32 = arith.constant 0 : i32
    %c0_i32_0 = arith.constant 0 : i32
    %c0_i32_1 = arith.constant 0 : i32
    return %c0_i32, %c0_i32_0 : i32, i32
  }
  func.func @transform_6(%arg0: i32) -> (i32, i32) {
    %c0_i32 = arith.constant 0 : i32
    %c0_i32_0 = arith.constant 0 : i32
    return %arg0, %c0_i32 : i32, i32
  }
  func.func @transform_7(%arg0: i32) -> (i32, i32) {
    %c0_i32 = arith.constant 0 : i32
    %c0_i32_0 = arith.constant 0 : i32
    return %arg0, %c0_i32 : i32, i32
  }
  func.func @transform_8(%arg0: i32) -> (i32, i32) {
    %c0_i32 = arith.constant 0 : i32
    %c0_i32_0 = arith.constant 0 : i32
    return %arg0, %c0_i32 : i32, i32
  }
}

</mosaic_0001>

<llo_original>
// kernel: _rnn_critic_apply.1
$region0: #{_rnn_critic_apply.1}
  #allocation0 [shape = 'u32[]', space=smem, size = 0x4, offset = 0x4, fixed_abs, tag = 'smem constant byte address 0x4 - core index']
  #allocation1 [shape = 'u32[144,128]{1,0:T(1,128)}', space=vmem, size = 0x12000, scoped, tag = 'internal scratch']
  #allocation2 [shape = 'f32[1,1]{1,0:T(1,128)S(6)}', space=smem, size = 0x200, scoped, tag = 'scoped memory for _rnn_critic_apply.1']
  %s0 = inlined_call_operand.vmem [shape: f32[8,256], index: 0, kind: input, shape index: {}]
  %s1 = inlined_call_operand.vmem [shape: f32[8,128], index: 1, kind: input, shape index: {}]
  %s2 = inlined_call_operand.hbm [shape: bf16[256,512], index: 2, kind: input, shape index: {}]
  %s3 = inlined_call_operand.vmem [shape: f32[1,512], index: 3, kind: input, shape index: {}]
  %s4 = inlined_call_operand.vmem [shape: f32[1,128], index: 4, kind: input, shape index: {}]
  %s5 = inlined_call_operand.<no memory space> [shape: f32[1,1], index: 5, kind: input, shape index: {}]
  %s6 = inlined_call_operand.vmem [shape: f32[8,1], index: 6, kind: output, shape index: {0}]
  %s7 = inlined_call_operand.hbm [shape: f32[8,128], index: 7, kind: output, shape index: {1}]
  %s8 = inlined_call_operand.hbm [shape: f32[8,128], index: 8, kind: output, shape index: {2}]
  %9 = xla_tuple %s6, %s7, %s8
  %s10 = sld [smem:[#allocation0]]
  $region54: #{_rnn_critic_apply.1} parent=0
    _
  %s12 = ssub.s32 1, %s10
  %s13 = scalar_select 0, %s12, %s10
  %14 = sst [smem:[#allocation2]] %s5
  $region1: #{_rnn_critic_apply.1} parent=0
    #allocation3 [shape = 'u8[262144]{0}', space=vmem, size = 0x40000, scoped, tag = 'input window, operand 2, single buffered']
    #allocation4 [shape = 's32[1]{0}', space=sflag, size = 0x4, scoped, tag = 'scoped memory for _rnn_critic_apply.1']
    #allocation5 [shape = 's32[1]{0}', space=sflag, size = 0x4, scoped, tag = 'scoped memory for _rnn_critic_apply.1']
    #allocation6 [shape = 'u8[4096]{0}', space=vmem, size = 0x1000, scoped, tag = 'output window, operand 1, single buffered']
    #allocation7 [shape = 'u8[4096]{0}', space=vmem, size = 0x1000, scoped, tag = 'output window, operand 2, single buffered']
    #allocation8 [shape = 's32[1]{0}', space=sflag, size = 0x4, scoped, tag = 'scoped memory for _rnn_critic_apply.1']
    %15 = vsyncpa [#allocation4], 0
    %16 = vsyncpa [#allocation5], 0
    %17 = vsyncpa [#allocation8], 0
    // Predicated region
    $region2: #{_rnn_critic_apply.1} parent=1 // pred_check
      _
    $region3: #{_rnn_critic_apply.1} parent=1 // pred_check_branch
      %19 = sbr.rel (0) target = $region5
    $region4: #{_rnn_critic_apply.1} parent=1 // pred_region
      _
    $region5: #{_rnn_critic_apply.1} parent=1 // pred_fallthru
      _
    // Predicated region
    $region6: #{_rnn_critic_apply.1} parent=1 // pred_check
      _
    $region7: #{_rnn_critic_apply.1} parent=1 // pred_check_branch
      %21 = sbr.rel (0) target = $region9
    $region8: #{_rnn_critic_apply.1} parent=1 // pred_region
      _
    $region9: #{_rnn_critic_apply.1} parent=1 // pred_fallthru
      _
    // Predicated region
    $region10: #{_rnn_critic_apply.1} parent=1 // pred_check
      _
    $region11: #{_rnn_critic_apply.1} parent=1 // pred_check_branch
      %23 = sbr.rel (0) target = $region13
    $region12: #{_rnn_critic_apply.1} parent=1 // pred_region
      %s25 = ssub.s32 8192, 8192
      %26 = vsyncadd [#allocation4], %s25
      %s27 = sshll.u32 [#allocation3], 4
      %s28 = int_to_ptr.vmem [resolvable:$true] %s27
      %33 = dma.hbm_to_vmem [thread:$0]  %s2, 8192, %s28, [#allocation4], 256, 256, 16
    $region13: #{_rnn_critic_apply.1} parent=1 // pred_fallthru
      _
    // Predicated region
    $region14: #{_rnn_critic_apply.1} parent=1 // pred_check
      _
    $region15: #{_rnn_critic_apply.1} parent=1 // pred_check_branch
      %35 = sbr.rel (0) target = $region17
    $region16: #{_rnn_critic_apply.1} parent=1 // pred_region
      _
    $region17: #{_rnn_critic_apply.1} parent=1 // pred_fallthru
      _
    // Predicated region
    $region18: #{_rnn_critic_apply.1} parent=1 // pred_check
      _
    $region19: #{_rnn_critic_apply.1} parent=1 // pred_check_branch
      %37 = sbr.rel (0) target = $region21
    $region20: #{_rnn_critic_apply.1} parent=1 // pred_region
      _
    $region21: #{_rnn_critic_apply.1} parent=1 // pred_fallthru
      _
    // Predicated region
    $region22: #{_rnn_critic_apply.1} parent=1 // pred_check
      _
    $region23: #{_rnn_critic_apply.1} parent=1 // pred_check_branch
      %39 = sbr.rel (0) target = $region25
    $region24: #{_rnn_critic_apply.1} parent=1 // pred_region
      _
    $region25: #{_rnn_critic_apply.1} parent=1 // pred_fallthru
      _
    // Predicated region
    $region26: #{_rnn_critic_apply.1} parent=1 // pred_check
      _
    $region27: #{_rnn_critic_apply.1} parent=1 // pred_check_branch
      %41 = sbr.rel (0) target = $region29
    $region28: #{_rnn_critic_apply.1} parent=1 // pred_region
      %42 = dma.done [#allocation4], 8192
    $region29: #{_rnn_critic_apply.1} parent=1 // pred_fallthru
      _
    %v43 = vld [vmem:[%s0] sm:$0xff]
    %v44 = vld [vmem:[%s0 + $0x8] sm:$0xff]
    %v45 = vpack.c.bf16 %v43, %v43
    %v46 = vpack.c.bf16 %v44, %v44
    %v47 = vld [vmem:[#allocation3] sm:$0xff]
    %v48 = vld [vmem:[#allocation3 + $0x8] sm:$0xff]
    %v49 = vld [vmem:[#allocation3 + $0x10] sm:$0xff]
    %v50 = vld [vmem:[#allocation3 + $0x18] sm:$0xff]
    %v51 = vld [vmem:[#allocation3 + $0x20] sm:$0xff]
    %v52 = vld [vmem:[#allocation3 + $0x28] sm:$0xff]
    %v53 = vld [vmem:[#allocation3 + $0x30] sm:$0xff]
    %v54 = vld [vmem:[#allocation3 + $0x38] sm:$0xff]
    %v55 = vld [vmem:[#allocation3 + $0x40] sm:$0xff]
    %v56 = vld [vmem:[#allocation3 + $0x48] sm:$0xff]
    %v57 = vld [vmem:[#allocation3 + $0x50] sm:$0xff]
    %v58 = vld [vmem:[#allocation3 + $0x58] sm:$0xff]
    %v59 = vld [vmem:[#allocation3 + $0x60] sm:$0xff]
    %v60 = vld [vmem:[#allocation3 + $0x68] sm:$0xff]
    %v61 = vld [vmem:[#allocation3 + $0x70] sm:$0xff]
    %v62 = vld [vmem:[#allocation3 + $0x78] sm:$0xff]
    %v63 = vld [vmem:[#allocation3 + $0x80] sm:$0xff]
    %v64 = vld [vmem:[#allocation3 + $0x88] sm:$0xff]
    %v65 = vld [vmem:[#allocation3 + $0x90] sm:$0xff]
    %v66 = vld [vmem:[#allocation3 + $0x98] sm:$0xff]
    %v67 = vld [vmem:[#allocation3 + $0xa0] sm:$0xff]
    %v68 = vld [vmem:[#allocation3 + $0xa8] sm:$0xff]
    %v69 = vld [vmem:[#allocation3 + $0xb0] sm:$0xff]
    %v70 = vld [vmem:[#allocation3 + $0xb8] sm:$0xff]
    %v71 = vld [vmem:[#allocation3 + $0xc0] sm:$0xff]
    %v72 = vld [vmem:[#allocation3 + $0xc8] sm:$0xff]
    %v73 = vld [vmem:[#allocation3 + $0xd0] sm:$0xff]
    %v74 = vld [vmem:[#allocation3 + $0xd8] sm:$0xff]
    %v75 = vld [vmem:[#allocation3 + $0xe0] sm:$0xff]
    %v76 = vld [vmem:[#allocation3 + $0xe8] sm:$0xff]
    %v77 = vld [vmem:[#allocation3 + $0xf0] sm:$0xff]
    %v78 = vld [vmem:[#allocation3 + $0xf8] sm:$0xff]
    %v79 = vld [vmem:[#allocation3 + $0x100] sm:$0xff]
    %v80 = vld [vmem:[#allocation3 + $0x108] sm:$0xff]
    %v81 = vld [vmem:[#allocation3 + $0x110] sm:$0xff]
    %v82 = vld [vmem:[#allocation3 + $0x118] sm:$0xff]
    %v83 = vld [vmem:[#allocation3 + $0x120] sm:$0xff]
    %v84 = vld [vmem:[#allocation3 + $0x128] sm:$0xff]
    %v85 = vld [vmem:[#allocation3 + $0x130] sm:$0xff]
    %v86 = vld [vmem:[#allocation3 + $0x138] sm:$0xff]
    %v87 = vld [vmem:[#allocation3 + $0x140] sm:$0xff]
    %v88 = vld [vmem:[#allocation3 + $0x148] sm:$0xff]
    %v89 = vld [vmem:[#allocation3 + $0x150] sm:$0xff]
    %v90 = vld [vmem:[#allocation3 + $0x158] sm:$0xff]
    %v91 = vld [vmem:[#allocation3 + $0x160] sm:$0xff]
    %v92 = vld [vmem:[#allocation3 + $0x168] sm:$0xff]
    %v93 = vld [vmem:[#allocation3 + $0x170] sm:$0xff]
    %v94 = vld [vmem:[#allocation3 + $0x178] sm:$0xff]
    %v95 = vld [vmem:[#allocation3 + $0x180] sm:$0xff]
    %v96 = vld [vmem:[#allocation3 + $0x188] sm:$0xff]
    %v97 = vld [vmem:[#allocation3 + $0x190] sm:$0xff]
    %v98 = vld [vmem:[#allocation3 + $0x198] sm:$0xff]
    %v99 = vld [vmem:[#allocation3 + $0x1a0] sm:$0xff]
    %v100 = vld [vmem:[#allocation3 + $0x1a8] sm:$0xff]
    %v101 = vld [vmem:[#allocation3 + $0x1b0] sm:$0xff]
    %v102 = vld [vmem:[#allocation3 + $0x1b8] sm:$0xff]
    %v103 = vld [vmem:[#allocation3 + $0x1c0] sm:$0xff]
    %v104 = vld [vmem:[#allocation3 + $0x1c8] sm:$0xff]
    %v105 = vld [vmem:[#allocation3 + $0x1d0] sm:$0xff]
    %v106 = vld [vmem:[#allocation3 + $0x1d8] sm:$0xff]
    %v107 = vld [vmem:[#allocation3 + $0x1e0] sm:$0xff]
    %v108 = vld [vmem:[#allocation3 + $0x1e8] sm:$0xff]
    %v109 = vld [vmem:[#allocation3 + $0x1f0] sm:$0xff]
    %v110 = vld [vmem:[#allocation3 + $0x1f8] sm:$0xff]
    %v111 = vld [vmem:[%s3] sm:$0xf]
    %v113 = vlaneseq
    %v114 = vshrl.u32 %v113, 7
    %v115 = vsub.s32 0, %v114
    %v116 = vrot.slane %v111, %v115
    %v117 = vlaneseq
    %v118 = vshrl.u32 %v117, 7
    %v119 = vsub.s32 1, %v118
    %v120 = vrot.slane %v111, %v119
    %v121 = vlaneseq
    %v122 = vshrl.u32 %v121, 7
    %v123 = vsub.s32 2, %v122
    %v124 = vrot.slane %v111, %v123
    %v125 = vlaneseq
    %v126 = vshrl.u32 %v125, 7
    %v127 = vsub.s32 3, %v126
    %v128 = vrot.slane %v111, %v127
    %v197 = vunpack.c.l.b16 %v47
    %v198 = vunpack.c.h.b16 %v47
    %v199 = vunpack.c.l.b16 %v48
    %v200 = vunpack.c.h.b16 %v48
    %v201 = vunpack.c.l.b16 %v49
    %v202 = vunpack.c.h.b16 %v49
    %v203 = vunpack.c.l.b16 %v50
    %v204 = vunpack.c.h.b16 %v50
    %v205 = vunpack.c.l.b16 %v51
    %v206 = vunpack.c.h.b16 %v51
    %v207 = vunpack.c.l.b16 %v52
    %v208 = vunpack.c.h.b16 %v52
    %v209 = vunpack.c.l.b16 %v53
    %v210 = vunpack.c.h.b16 %v53
    %v211 = vunpack.c.l.b16 %v54
    %v212 = vunpack.c.h.b16 %v54
    %v213 = vunpack.c.l.b16 %v55
    %v214 = vunpack.c.h.b16 %v55
    %v215 = vunpack.c.l.b16 %v56
    %v216 = vunpack.c.h.b16 %v56
    %v217 = vunpack.c.l.b16 %v57
    %v218 = vunpack.c.h.b16 %v57
    %v219 = vunpack.c.l.b16 %v58
    %v220 = vunpack.c.h.b16 %v58
    %v221 = vunpack.c.l.b16 %v59
    %v222 = vunpack.c.h.b16 %v59
    %v223 = vunpack.c.l.b16 %v60
    %v224 = vunpack.c.h.b16 %v60
    %v225 = vunpack.c.l.b16 %v61
    %v226 = vunpack.c.h.b16 %v61
    %v227 = vunpack.c.l.b16 %v62
    %v228 = vunpack.c.h.b16 %v62
    %v229 = vunpack.c.l.b16 %v63
    %v230 = vunpack.c.h.b16 %v63
    %v231 = vunpack.c.l.b16 %v64
    %v232 = vunpack.c.h.b16 %v64
    %v233 = vunpack.c.l.b16 %v65
    %v234 = vunpack.c.h.b16 %v65
    %v235 = vunpack.c.l.b16 %v66
    %v236 = vunpack.c.h.b16 %v66
    %v237 = vunpack.c.l.b16 %v67
    %v238 = vunpack.c.h.b16 %v67
    %v239 = vunpack.c.l.b16 %v68
    %v240 = vunpack.c.h.b16 %v68
    %v241 = vunpack.c.l.b16 %v69
    %v242 = vunpack.c.h.b16 %v69
    %v243 = vunpack.c.l.b16 %v70
    %v244 = vunpack.c.h.b16 %v70
    %v245 = vunpack.c.l.b16 %v71
    %v246 = vunpack.c.h.b16 %v71
    %v247 = vunpack.c.l.b16 %v72
    %v248 = vunpack.c.h.b16 %v72
    %v249 = vunpack.c.l.b16 %v73
    %v250 = vunpack.c.h.b16 %v73
    %v251 = vunpack.c.l.b16 %v74
    %v252 = vunpack.c.h.b16 %v74
    %v253 = vunpack.c.l.b16 %v75
    %v254 = vunpack.c.h.b16 %v75
    %v255 = vunpack.c.l.b16 %v76
    %v256 = vunpack.c.h.b16 %v76
    %v257 = vunpack.c.l.b16 %v77
    %v258 = vunpack.c.h.b16 %v77
    %v259 = vunpack.c.l.b16 %v78
    %v260 = vunpack.c.h.b16 %v78
    %v261 = vunpack.c.l.b16 %v79
    %v262 = vunpack.c.h.b16 %v79
    %v263 = vunpack.c.l.b16 %v80
    %v264 = vunpack.c.h.b16 %v80
    %v265 = vunpack.c.l.b16 %v81
    %v266 = vunpack.c.h.b16 %v81
    %v267 = vunpack.c.l.b16 %v82
    %v268 = vunpack.c.h.b16 %v82
    %v269 = vunpack.c.l.b16 %v83
    %v270 = vunpack.c.h.b16 %v83
    %v271 = vunpack.c.l.b16 %v84
    %v272 = vunpack.c.h.b16 %v84
    %v273 = vunpack.c.l.b16 %v85
    %v274 = vunpack.c.h.b16 %v85
    %v275 = vunpack.c.l.b16 %v86
    %v276 = vunpack.c.h.b16 %v86
    %v277 = vunpack.c.l.b16 %v87
    %v278 = vunpack.c.h.b16 %v87
    %v279 = vunpack.c.l.b16 %v88
    %v280 = vunpack.c.h.b16 %v88
    %v281 = vunpack.c.l.b16 %v89
    %v282 = vunpack.c.h.b16 %v89
    %v283 = vunpack.c.l.b16 %v90
    %v284 = vunpack.c.h.b16 %v90
    %v285 = vunpack.c.l.b16 %v91
    %v286 = vunpack.c.h.b16 %v91
    %v287 = vunpack.c.l.b16 %v92
    %v288 = vunpack.c.h.b16 %v92
    %v289 = vunpack.c.l.b16 %v93
    %v290 = vunpack.c.h.b16 %v93
    %v291 = vunpack.c.l.b16 %v94
    %v292 = vunpack.c.h.b16 %v94
    %v293 = vunpack.c.l.b16 %v95
    %v294 = vunpack.c.h.b16 %v95
    %v295 = vunpack.c.l.b16 %v96
    %v296 = vunpack.c.h.b16 %v96
    %v297 = vunpack.c.l.b16 %v97
    %v298 = vunpack.c.h.b16 %v97
    %v299 = vunpack.c.l.b16 %v98
    %v300 = vunpack.c.h.b16 %v98
    %v301 = vunpack.c.l.b16 %v99
    %v302 = vunpack.c.h.b16 %v99
    %v303 = vunpack.c.l.b16 %v100
    %v304 = vunpack.c.h.b16 %v100
    %v305 = vunpack.c.l.b16 %v101
    %v306 = vunpack.c.h.b16 %v101
    %v307 = vunpack.c.l.b16 %v102
    %v308 = vunpack.c.h.b16 %v102
    %v309 = vunpack.c.l.b16 %v103
    %v310 = vunpack.c.h.b16 %v103
    %v311 = vunpack.c.l.b16 %v104
    %v312 = vunpack.c.h.b16 %v104
    %v313 = vunpack.c.l.b16 %v105
    %v314 = vunpack.c.h.b16 %v105
    %v315 = vunpack.c.l.b16 %v106
    %v316 = vunpack.c.h.b16 %v106
    %v317 = vunpack.c.l.b16 %v107
    %v318 = vunpack.c.h.b16 %v107
    %v319 = vunpack.c.l.b16 %v108
    %v320 = vunpack.c.h.b16 %v108
    %v321 = vunpack.c.l.b16 %v109
    %v322 = vunpack.c.h.b16 %v109
    %v323 = vunpack.c.l.b16 %v110
    %v324 = vunpack.c.h.b16 %v110
    %v325 = vpack.c.b16 %v201, %v197
    %v326 = vpack.c.b16 %v202, %v198
    %v327 = vpack.c.b16 %v203, %v199
    %v328 = vpack.c.b16 %v204, %v200
    %v329 = vpack.c.b16 %v209, %v205
    %v330 = vpack.c.b16 %v210, %v206
    %v331 = vpack.c.b16 %v211, %v207
    %v332 = vpack.c.b16 %v212, %v208
    %v333 = vpack.c.b16 %v217, %v213
    %v334 = vpack.c.b16 %v218, %v214
    %v335 = vpack.c.b16 %v219, %v215
    %v336 = vpack.c.b16 %v220, %v216
    %v337 = vpack.c.b16 %v225, %v221
    %v338 = vpack.c.b16 %v226, %v222
    %v339 = vpack.c.b16 %v227, %v223
    %v340 = vpack.c.b16 %v228, %v224
    %v341 = vpack.c.b16 %v233, %v229
    %v342 = vpack.c.b16 %v234, %v230
    %v343 = vpack.c.b16 %v235, %v231
    %v344 = vpack.c.b16 %v236, %v232
    %v345 = vpack.c.b16 %v241, %v237
    %v346 = vpack.c.b16 %v242, %v238
    %v347 = vpack.c.b16 %v243, %v239
    %v348 = vpack.c.b16 %v244, %v240
    %v349 = vpack.c.b16 %v249, %v245
    %v350 = vpack.c.b16 %v250, %v246
    %v351 = vpack.c.b16 %v251, %v247
    %v352 = vpack.c.b16 %v252, %v248
    %v353 = vpack.c.b16 %v257, %v253
    %v354 = vpack.c.b16 %v258, %v254
    %v355 = vpack.c.b16 %v259, %v255
    %v356 = vpack.c.b16 %v260, %v256
    %v357 = vpack.c.b16 %v265, %v261
    %v358 = vpack.c.b16 %v266, %v262
    %v359 = vpack.c.b16 %v267, %v263
    %v360 = vpack.c.b16 %v268, %v264
    %v361 = vpack.c.b16 %v273, %v269
    %v362 = vpack.c.b16 %v274, %v270
    %v363 = vpack.c.b16 %v275, %v271
    %v364 = vpack.c.b16 %v276, %v272
    %v365 = vpack.c.b16 %v281, %v277
    %v366 = vpack.c.b16 %v282, %v278
    %v367 = vpack.c.b16 %v283, %v279
    %v368 = vpack.c.b16 %v284, %v280
    %v369 = vpack.c.b16 %v289, %v285
    %v370 = vpack.c.b16 %v290, %v286
    %v371 = vpack.c.b16 %v291, %v287
    %v372 = vpack.c.b16 %v292, %v288
    %v373 = vpack.c.b16 %v297, %v293
    %v374 = vpack.c.b16 %v298, %v294
    %v375 = vpack.c.b16 %v299, %v295
    %v376 = vpack.c.b16 %v300, %v296
    %v377 = vpack.c.b16 %v305, %v301
    %v378 = vpack.c.b16 %v306, %v302
    %v379 = vpack.c.b16 %v307, %v303
    %v380 = vpack.c.b16 %v308, %v304
    %v381 = vpack.c.b16 %v313, %v309
    %v382 = vpack.c.b16 %v314, %v310
    %v383 = vpack.c.b16 %v315, %v311
    %v384 = vpack.c.b16 %v316, %v312
    %v385 = vpack.c.b16 %v321, %v317
    %v386 = vpack.c.b16 %v322, %v318
    %v387 = vpack.c.b16 %v323, %v319
    %v388 = vpack.c.b16 %v324, %v320
    %453 = vmatprep.subr.bf16.mxu0 %v326
    %454 = vmatpush1.bf16.msra.mxu0 %v325
    %455 = vmatprep.subr.bf16.mxu0 %v330
    %456 = vmatpush1.bf16.msra.mxu0 %v329
    %457 = vmatprep.subr.bf16.mxu0 %v334
    %458 = vmatpush1.bf16.msra.mxu0 %v333
    %459 = vmatprep.subr.bf16.mxu0 %v338
    %460 = vmatpush1.bf16.msra.mxu0 %v337
    %461 = vmatprep.subr.bf16.mxu0 %v342
    %462 = vmatpush1.bf16.msra.mxu0 %v341
    %463 = vmatprep.subr.bf16.mxu0 %v346
    %464 = vmatpush1.bf16.msra.mxu0 %v345
    %465 = vmatprep.subr.bf16.mxu0 %v350
    %466 = vmatpush1.bf16.msra.mxu0 %v349
    %467 = vmatprep.subr.bf16.mxu0 %v354
    %468 = vmatpush1.bf16.msra.mxu0 %v353
    %469 = vmatprep.subr.bf16.mxu0 %v358
    %470 = vmatpush1.bf16.msra.mxu0 %v357
    %471 = vmatprep.subr.bf16.mxu0 %v362
    %472 = vmatpush1.bf16.msra.mxu0 %v361
    %473 = vmatprep.subr.bf16.mxu0 %v366
    %474 = vmatpush1.bf16.msra.mxu0 %v365
    %475 = vmatprep.subr.bf16.mxu0 %v370
    %476 = vmatpush1.bf16.msra.mxu0 %v369
    %477 = vmatprep.subr.bf16.mxu0 %v374
    %478 = vmatpush1.bf16.msra.mxu0 %v373
    %479 = vmatprep.subr.bf16.mxu0 %v378
    %480 = vmatpush1.bf16.msra.mxu0 %v377
    %481 = vmatprep.subr.bf16.mxu0 %v382
    %482 = vmatpush1.bf16.msra.mxu0 %v381
    %483 = vmatprep.subr.bf16.mxu0 %v386
    %484 = vmatpush1.bf16.msra.mxu0 %v385
    %485 = vmatprep.mubr.bf16.mxu0 %v46
    %486 = vmatmul.mubr.bf16.gmra.mrb[0].mxu0 %v45
    %v487 = vpop.f32.mrb[0].mxu0
    %v488 = vadd.f32 %v116, %v487
    %v489 = vpop.f32.mrb[0].mxu0
    %v490 = vadd.f32 %v120, %v489
    %v491 = vpop.f32.mrb[0].mxu0
    %v492 = vpop.f32.mrb[0].mxu0
    %493 = vdwg.mxu0
    %494 = vmatprep.subr.bf16.mxu0 %v328
    %495 = vmatpush1.bf16.msra.mxu0 %v327
    %496 = vmatprep.subr.bf16.mxu0 %v332
    %497 = vmatpush1.bf16.msra.mxu0 %v331
    %498 = vmatprep.subr.bf16.mxu0 %v336
    %499 = vmatpush1.bf16.msra.mxu0 %v335
    %500 = vmatprep.subr.bf16.mxu0 %v340
    %501 = vmatpush1.bf16.msra.mxu0 %v339
    %502 = vmatprep.subr.bf16.mxu0 %v344
    %503 = vmatpush1.bf16.msra.mxu0 %v343
    %504 = vmatprep.subr.bf16.mxu0 %v348
    %505 = vmatpush1.bf16.msra.mxu0 %v347
    %506 = vmatprep.subr.bf16.mxu0 %v352
    %507 = vmatpush1.bf16.msra.mxu0 %v351
    %508 = vmatprep.subr.bf16.mxu0 %v356
    %509 = vmatpush1.bf16.msra.mxu0 %v355
    %510 = vmatprep.subr.bf16.mxu0 %v360
    %511 = vmatpush1.bf16.msra.mxu0 %v359
    %512 = vmatprep.subr.bf16.mxu0 %v364
    %513 = vmatpush1.bf16.msra.mxu0 %v363
    %514 = vmatprep.subr.bf16.mxu0 %v368
    %515 = vmatpush1.bf16.msra.mxu0 %v367
    %516 = vmatprep.subr.bf16.mxu0 %v372
    %517 = vmatpush1.bf16.msra.mxu0 %v371
    %518 = vmatprep.subr.bf16.mxu0 %v376
    %519 = vmatpush1.bf16.msra.mxu0 %v375
    %520 = vmatprep.subr.bf16.mxu0 %v380
    %521 = vmatpush1.bf16.msra.mxu0 %v379
    %522 = vmatprep.subr.bf16.mxu0 %v384
    %523 = vmatpush1.bf16.msra.mxu0 %v383
    %524 = vmatprep.subr.bf16.mxu0 %v388
    %525 = vmatpush1.bf16.msra.mxu0 %v387
    %526 = vmatprep.mubr.bf16.mxu0 %v46
    %527 = vmatmul.mubr.bf16.gmra.mrb[0].mxu0 %v45
    %v528 = vpop.f32.mrb[0].mxu0
    %v529 = vadd.f32 %v124, %v528
    %v530 = vpop.f32.mrb[0].mxu0
    %v531 = vadd.f32 %v128, %v530
    %v532 = vpop.f32.mrb[0].mxu0
    %v533 = vpop.f32.mrb[0].mxu0
    %534 = vdwg.mxu0
    %v535 = vmul.f32 %v488, 0.5
    %v536 = vtanh.pop %v535
    %v537 = vmul.f32 %v536, 0.5
    %v538 = vadd.f32 %v537, 0.5
    %v539 = vmul.f32 %v490, 0.5
    %v540 = vtanh.pop %v539
    %v541 = vmul.f32 %v540, 0.5
    %v542 = vadd.f32 %v541, 0.5
    %v543 = vtanh.pop %v529
    %v544 = vmul.f32 %v531, 0.5
    %v545 = vtanh.pop %v544
    %v546 = vmul.f32 %v545, 0.5
    %v547 = vadd.f32 %v546, 0.5
    %v548 = vld [vmem:[%s1] sm:$0xff]
    %v549 = vmul.f32 %v542, %v548
    %v550 = vmul.f32 %v538, %v543
    %v551 = vadd.f32 %v549, %v550
    %v552 = vtanh.pop %v551
    %v553 = vmul.f32 %v547, %v552
    %v554 = vld [vmem:[%s4] sm:$0x1]
    %v556 = vlaneseq
    %v557 = vshrl.u32 %v556, 7
    %v558 = vsub.s32 0, %v557
    %v559 = vrot.slane %v554, %v558
    %v561 = vmul.f32 %v553, %v559
    %562 = vadd.xlane.f32.xlu0 %v561
    %v563 = vpop.xlane.xlu0 %562
    %s564 = sld [smem:[#allocation2]]
    %v565 = vstv %s564
    %v566 = vadd.f32 %v563, %v565
    %vm567 = vcmask 7168
    %568 = vst.msk [vmem:[%s6] sm:$0xff] %vm567, %v566
    %569 = vst [vmem:[#allocation6] sm:$0xff] %v553
    %570 = vst [vmem:[#allocation7] sm:$0xff] %v551
    // Predicated region
    $region30: #{_rnn_critic_apply.1} parent=1 // pred_check
      _
    $region31: #{_rnn_critic_apply.1} parent=1 // pred_check_branch
      %572 = sbr.rel (0) target = $region33
    $region32: #{_rnn_critic_apply.1} parent=1 // pred_region
      _
    $region33: #{_rnn_critic_apply.1} parent=1 // pred_fallthru
      _
    // Predicated region
    $region34: #{_rnn_critic_apply.1} parent=1 // pred_check
      _
    $region35: #{_rnn_critic_apply.1} parent=1 // pred_check_branch
      %574 = sbr.rel (0) target = $region37
    $region36: #{_rnn_critic_apply.1} parent=1 // pred_region
      %s576 = ssub.s32 128, 128
      %577 = vsyncadd [#allocation5], %s576
      %s579 = sshll.u32 [#allocation6], 4
      %s580 = int_to_ptr.vmem [resolvable:$true] %s579
      %582 = dma.vmem_to_hbm [thread:$0]  %s580, 128, %s7, [#allocation5]
    $region37: #{_rnn_critic_apply.1} parent=1 // pred_fallthru
      _
    // Predicated region
    $region38: #{_rnn_critic_apply.1} parent=1 // pred_check
      _
    $region39: #{_rnn_critic_apply.1} parent=1 // pred_check_branch
      %584 = sbr.rel (0) target = $region41
    $region40: #{_rnn_critic_apply.1} parent=1 // pred_region
      %s586 = ssub.s32 128, 128
      %587 = vsyncadd [#allocation8], %s586
      %s589 = sshll.u32 [#allocation7], 4
      %s590 = int_to_ptr.vmem [resolvable:$true] %s589
      %592 = dma.vmem_to_hbm [thread:$0]  %s590, 128, %s8, [#allocation8]
    $region41: #{_rnn_critic_apply.1} parent=1 // pred_fallthru
      _
    // Predicated region
    $region42: #{_rnn_critic_apply.1} parent=1 // pred_check
      _
    $region43: #{_rnn_critic_apply.1} parent=1 // pred_check_branch
      %594 = sbr.rel (0) target = $region45
    $region44: #{_rnn_critic_apply.1} parent=1 // pred_region
      _
    $region45: #{_rnn_critic_apply.1} parent=1 // pred_fallthru
      _
    // Predicated region
    $region46: #{_rnn_critic_apply.1} parent=1 // pred_check
      _
    $region47: #{_rnn_critic_apply.1} parent=1 // pred_check_branch
      %596 = sbr.rel (0) target = $region49
    $region48: #{_rnn_critic_apply.1} parent=1 // pred_region
      %597 = dma.done [#allocation5], 128
    $region49: #{_rnn_critic_apply.1} parent=1 // pred_fallthru
      _
    // Predicated region
    $region50: #{_rnn_critic_apply.1} parent=1 // pred_check
      _
    $region51: #{_rnn_critic_apply.1} parent=1 // pred_check_branch
      %599 = sbr.rel (0) target = $region53
    $region52: #{_rnn_critic_apply.1} parent=1 // pred_region
      %600 = dma.done [#allocation8], 128
    $region53: #{_rnn_critic_apply.1} parent=1 // pred_fallthru
      _
    %601 = vsyncpa [#allocation4], 1
    %602 = vsyncpa [#allocation5], 1
    %603 = vsyncpa [#allocation8], 1

</llo_original>
